<compile_context>
chip_gen: v6e
topology: v6e:2x2x1
jax: 0.10.0
libtpu: 0.0.40
codegen_flags: <defaults>
</compile_context>

<pallas_src>
import numpy as np
import jax
import jax.numpy as jnp
from jax import lax
from jax.experimental import pallas as pl
from jax.experimental.pallas import tpu as pltpu


_GROUP = 8                   # rows assembled per dense (8, lanes) store
_MAX_TILE = 512              # max gathered rows per grid step (resident path)
_DMA_BLOCK = 32              # rows gathered per grid step (HBM-gather fallback)
_MAX_ROWS_PER_CALL = 32768   # chunk size so scalar-prefetch indices stay small in SMEM


def _round_up(x, m):
    return ((x + m - 1) // m) * m


def _vmem_capacity_bytes():
    """Generation-aware VMEM size (128 MiB v5e/v6e, 64 MiB per TC on v7x)."""
    try:
        return int(pltpu.get_tpu_info().vmem_capacity_bytes)
    except Exception:
        return 64 << 20      # conservative: assume the smallest (v7x per-TC)


def _resident_budget_bytes():
    # Single-buffered table must leave room for output double-buffer + scratch.
    return max(_vmem_capacity_bytes() // 2 - (8 << 20), 8 << 20)


# ----------------------- resident-table gather kernel ------------------------

def _resident_gather_kernel(idx_ref, table_ref, out_ref):
    # idx_ref   : (t_pad,) int32 in SMEM (scalar prefetch); -1 => emit zeros
    # table_ref : (n_rows, dim) embedding table, single VMEM-resident copy
    # out_ref   : (tile, dim) lane-dense output tile
    tile, dim = out_ref.shape
    base = pl.program_id(0) * tile
    # Hoisted out of the loop (JAX does not CSE broadcasts).
    sub = lax.broadcasted_iota(jnp.int32, (_GROUP, dim), 0)
    zeros = jnp.zeros((_GROUP, dim), out_ref.dtype)

    def group_body(g, carry):
        off = pl.multiple_of(g * _GROUP, _GROUP)
        acc = zeros
        for k in range(_GROUP):                             # 8 rows per dense store
            i = idx_ref[base + off + k]                     # cheap SMEM scalar read
            row = table_ref[pl.ds(jnp.maximum(i, 0), 1), :] # (1, dim) VMEM row load
            # VALU select (not an XLU sublane insert): place row k, keep zeros
            # for masked (-1) slots.
            acc = jnp.where((sub == k) & (i >= 0), row, acc)
        out_ref[pl.ds(off, _GROUP), :] = acc                # dense (8, 128) store
        return carry

    # Fully unrolled so the LLO scheduler can interleave loads / selects / stores
    # across groups.
    lax.fori_loop(0, tile // _GROUP, group_body, 0, unroll=True)


def _masked_gather_resident(table, flat_idx):
    n_rows, dim = table.shape
    itemsize = table.dtype.itemsize
    t = int(flat_idx.shape[0])
    tile = min(_MAX_TILE, _round_up(max(t, 1), _GROUP))
    t_pad = _round_up(max(t, 1), tile)
    idx_pad = jnp.full((t_pad,), -1, jnp.int32).at[:t].set(
        jnp.clip(flat_idx.astype(jnp.int32), -1, n_rows - 1))

    table_bytes = int(n_rows) * int(dim) * itemsize
    out_bytes = t_pad * int(dim) * itemsize
    vmem_cap = _vmem_capacity_bytes()
    # One table copy (single-buffered) + double-buffered output tiles + slack.
    need = table_bytes + 2 * tile * int(dim) * itemsize + (2 << 20)
    vmem_limit = int(min(max(need, 16 << 20), vmem_cap - (8 << 20)))
    # When table streaming dominates HBM traffic, do not shard the grid across
    # TensorCores (megacore would duplicate the table copy); when the output
    # dominates, let both cores split the tiles.
    semantics = ("parallel",) if table_bytes <= out_bytes else ("arbitrary",)

    out = pl.pallas_call(
        _resident_gather_kernel,
        out_shape=jax.ShapeDtypeStruct((t_pad, dim), table.dtype),
        grid_spec=pltpu.PrefetchScalarGridSpec(
            num_scalar_prefetch=1,
            grid=(t_pad // tile,),
            in_specs=[
                # Whole table in VMEM, single copy, constant across the grid.
                pl.BlockSpec(memory_space=pltpu.MemorySpace.VMEM),
            ],
            out_specs=pl.BlockSpec((tile, dim), lambda g, idx_smem: (g, 0)),
        ),
        compiler_params=pltpu.CompilerParams(
            dimension_semantics=semantics,
            vmem_limit_bytes=vmem_limit),
    )(idx_pad, table)
    return out[:t]


# ----------- fallback: batched HBM row-gather (table stays in HBM) -----------

def _dma_gather_kernel(idx_ref, valid_ref, table_hbm, out_ref, rows_vmem, sems):
    # idx_ref   : (t_pad,) int32 SMEM (clamped row ids; scalar prefetch)
    # valid_ref : (_DMA_BLOCK, 1) f32 VMEM block; 1.0 = keep row, 0.0 = zero row
    # table_hbm : (n_rows, dim) embedding table left in HBM (pl.ANY)
    # out_ref   : (_DMA_BLOCK, dim) output tile
    # rows_vmem : (_DMA_BLOCK, dim) VMEM staging buffer
    # sems      : (_DMA_BLOCK,) DMA semaphores
    base = pl.program_id(0) * _DMA_BLOCK
    copies = []
    for k in range(_DMA_BLOCK):                      # all row DMAs in flight at once
        i = idx_ref[base + k]
        cp = pltpu.make_async_copy(table_hbm.at[pl.ds(i, 1), :],
                                   rows_vmem.at[pl.ds(k, 1), :],
                                   sems.at[k])
        cp.start()
        copies.append(cp)
    for cp in copies:
        cp.wait()
    rows = rows_vmem[...]
    out_ref[...] = jnp.where(valid_ref[...] > 0.0, rows, jnp.zeros_like(rows))


def _masked_gather_dma(table, flat_idx):
    n_rows, dim = table.shape
    t = int(flat_idx.shape[0])
    t_pad = _round_up(max(t, 1), _DMA_BLOCK)
    idx = jnp.zeros((t_pad,), jnp.int32).at[:t].set(
        jnp.clip(flat_idx.astype(jnp.int32), 0, n_rows - 1))
    valid = jnp.zeros((t_pad, 1), jnp.float32).at[:t, 0].set(
        (flat_idx >= 0).astype(jnp.float32))

    out = pl.pallas_call(
        _dma_gather_kernel,
        out_shape=jax.ShapeDtypeStruct((t_pad, dim), table.dtype),
        grid_spec=pltpu.PrefetchScalarGridSpec(
            num_scalar_prefetch=1,
            grid=(t_pad // _DMA_BLOCK,),
            in_specs=[
                pl.BlockSpec((_DMA_BLOCK, 1), lambda g, idx_smem: (g, 0)),
                pl.BlockSpec(memory_space=pl.ANY),       # table stays in HBM
            ],
            out_specs=pl.BlockSpec((_DMA_BLOCK, dim), lambda g, idx_smem: (g, 0)),
            scratch_shapes=[
                pltpu.VMEM((_DMA_BLOCK, dim), table.dtype),
                pltpu.SemaphoreType.DMA((_DMA_BLOCK,)),
            ]),
        compiler_params=pltpu.CompilerParams(
            dimension_semantics=("parallel",)),
    )(idx, valid, table)
    return out[:t]


def masked_gather_rows(table, idx):
    """out[..., :] = table[idx[...]] if idx[...] >= 0 else zeros(dim)."""
    shape = idx.shape
    dim = int(table.shape[1])
    flat = idx.reshape(-1)
    t = int(flat.shape[0])
    if t == 0:
        return jnp.zeros(tuple(shape) + (dim,), table.dtype)

    itemsize = table.dtype.itemsize
    table_bytes = int(table.shape[0]) * dim * itemsize
    needed_bytes = t * dim * itemsize
    # Resident path only when the table fits the generation-aware budget AND is
    # not vastly larger than the rows actually gathered (otherwise streaming the
    # whole table from HBM each call wastes bandwidth -> use the HBM gather).
    use_resident = (table_bytes <= _resident_budget_bytes() and
                    table_bytes <= max(8 * needed_bytes, 2 << 20))
    gather = _masked_gather_resident if use_resident else _masked_gather_dma

    if t <= _MAX_ROWS_PER_CALL:
        out = gather(table, flat)
    else:
        parts = [gather(table, flat[s:s + _MAX_ROWS_PER_CALL])
                 for s in range(0, t, _MAX_ROWS_PER_CALL)]
        out = jnp.concatenate(parts, axis=0)
    return out.reshape(*shape, dim)


# --------------------------- host-side glue ----------------------------------

def get_norm_id(id_map, some_id):
    if some_id not in id_map:
        id_map[some_id] = len(id_map)
    return id_map[some_id]


def norm_graph(node_id_map, edge_id_map, edge_list):
    return [(get_norm_id(node_id_map, e[0]),
             get_norm_id(node_id_map, e[1]),
             get_norm_id(edge_id_map, e[2])) for e in edge_list]


class GCNGraphEncoder:
    """JAX/Pallas port of the torch GCNGraphEncoder forward pass."""

    def __init__(self, no_nodes, no_relations, base_embedding_dim, max_length,
                 ent2id, rel2id, key):
        # TODO(synk): a pretrained NodeEncoder weight tensor could be passed in
        # place of the uniform(-1, 1) node table (is_pre_trained path).
        self.no_nodes = no_nodes
        self.no_relations = no_relations
        self.base_embedding_dim = base_embedding_dim
        self.max_length = max_length
        self.ent2id = ent2id
        self.rel2id = rel2id
        self.special_tokens = {"[PAD]": 0, "[MASK]": 1}
        k1, k2, k3 = jax.random.split(key, 3)
        # deterministic uniform(-1, 1) init, mirroring nn.Embedding.uniform_(-1, 1)
        self.node_table = jax.random.uniform(
            k1, (no_nodes, base_embedding_dim), jnp.float32, -1.0, 1.0)
        self.relation_table = jax.random.uniform(
            k2, (no_relations, base_embedding_dim), jnp.float32, -1.0, 1.0)
        self.special_table = jax.random.uniform(
            k3, (len(self.special_tokens), base_embedding_dim), jnp.float32, -1.0, 1.0)
        # One fused gather table: node rows first, relation rows offset by no_nodes,
        # so node_emb and relation_emb come out of a single Pallas launch.
        self.gather_table = jnp.concatenate(
            [self.node_table, self.relation_table], axis=0)

    def __call__(self, subgraphs_list, masked_nodes):
        num_subgraphs = len(subgraphs_list)
        norm_subgraph_list, batch_counts, batch_id_maps = [], [], []
        for ii in range(num_subgraphs):
            node_id_map, edge_type_map = {}, {}
            norm_subgraph_list.append(
                norm_graph(node_id_map, edge_type_map, subgraphs_list[ii]))
            batch_id_maps.append((node_id_map, edge_type_map))
            batch_counts.append((len(node_id_map), len(edge_type_map)))
        max_relations = max(c[1] for c in batch_counts)

        # Build gather indices (-1 == leave row as zeros), host-side glue.
        node_idx = np.full((num_subgraphs, self.max_length + 1), -1, np.int64)
        rel_idx = np.full((num_subgraphs, max_relations), -1, np.int64)
        for ii in range(num_subgraphs):
            node_id_map, edge_type_map = batch_id_maps[ii]
            masked_set = [int(x) for x in np.asarray(masked_nodes[ii]).tolist()]
            for node_id, norm_node_id in node_id_map.items():
                if node_id not in masked_set:
                    try:
                        n = int(self.ent2id[node_id])
                    except KeyError:
                        n = int(node_id)
                    if not (0 <= n < self.no_nodes):
                        # torch nn.Embedding would raise on an out-of-range index;
                        # never silently clamp to a real embedding row.
                        raise IndexError(
                            f"node embedding index {n} out of range [0, {self.no_nodes})")
                    node_idx[ii, norm_node_id] = n
            for relation_id, norm_relation_id in edge_type_map.items():
                try:
                    r = int(self.rel2id[relation_id])
                except KeyError:
                    r = int(relation_id) - 1
                if not (0 <= r < self.no_relations):
                    # also protects against the fallback producing -1/-2, which
                    # would collide with the "unused row" sentinel.
                    raise IndexError(
                        f"relation embedding index {r} out of range [0, {self.no_relations})")
                rel_idx[ii, norm_relation_id] = r

        # Offset valid relation indices into the fused table; keep -1 sentinels.
        rel_off = np.where(rel_idx >= 0, rel_idx + self.no_nodes, -1)
        flat_idx = np.concatenate(
            [node_idx.reshape(-1), rel_off.reshape(-1)]).astype(np.int32)

        # Hot path: one fused masked-gather Pallas kernel for nodes + relations.
        emb = masked_gather_rows(self.gather_table, jnp.asarray(flat_idx))
        n_node_rows = num_subgraphs * (self.max_length + 1)
        node_emb = emb[:n_node_rows].reshape(
            num_subgraphs, self.max_length + 1, self.base_embedding_dim)
        relation_emb = emb[n_node_rows:].reshape(
            num_subgraphs, max_relations, self.base_embedding_dim)

        # 2-row special-token lookup: plain JAX indexing (no kernel launch).
        special_tokens_embed = {}
        for token, tok_id in self.special_tokens.items():
            special_tokens_embed[tok_id + self.no_nodes] = {
                "token": token,
                "embed": self.special_table[tok_id][None, :],   # (1, D), like torch
            }

        return (norm_subgraph_list, node_emb, relation_emb,
                batch_id_maps, special_tokens_embed)


# --------------------------------- demo --------------------------------------

if __name__ == "__main__":
    key = jax.random.PRNGKey(0)
    no_nodes, no_relations = 10, 4
    base_embedding_dim, max_length = 128, 8
    ent2id = {100 + i: i for i in range(no_nodes)}
    rel2id = {200 + r: r for r in range(no_relations)}

    enc = GCNGraphEncoder(no_nodes, no_relations, base_embedding_dim,
                          max_length, ent2id, rel2id, key)

    subgraphs_list = [
        [(100, 101, 200), (101, 102, 201), (102, 100, 200)],
        [(105, 106, 202), (106, 107, 203), (107, 108, 202), (108, 105, 201)],
    ]
    masked_nodes = [jnp.array([101], jnp.int32), jnp.array([107, 108], jnp.int32)]

    (norm_list, node_emb, relation_emb,
     id_maps, special_tokens_embed) = enc(subgraphs_list, masked_nodes)
    jax.block_until_ready((node_emb, relation_emb))

    # --- spot-check the resident-path results against reference semantics ---
    nt = np.asarray(enc.node_table)
    rt = np.asarray(enc.relation_table)
    st = np.asarray(enc.special_table)
    ne = np.asarray(node_emb)
    re = np.asarray(relation_emb)

    assert ne.shape == (2, max_length + 1, base_embedding_dim)
    assert re.shape == (2, 3, base_embedding_dim)       # max_relations == 3
    assert np.allclose(ne[0, 0], nt[ent2id[100]])       # node 100 present
    assert np.allclose(ne[0, 1], 0.0)                   # node 101 masked -> zeros
    assert np.allclose(ne[0, 2], nt[ent2id[102]])
    assert np.allclose(ne[0, 3:], 0.0)                  # unused slots stay zero
    assert np.allclose(ne[1, 0], nt[ent2id[105]])
    assert np.allclose(ne[1, 1], nt[ent2id[106]])
    assert np.allclose(ne[1, 2], 0.0) and np.allclose(ne[1, 3], 0.0)  # 107,108 masked
    assert np.allclose(re[0, 0], rt[rel2id[200]])
    assert np.allclose(re[0, 1], rt[rel2id[201]])
    assert np.allclose(re[0, 2], 0.0)                   # unused relation slot
    assert np.allclose(re[1, 0], rt[rel2id[202]])
    assert np.allclose(re[1, 1], rt[rel2id[203]])
    assert np.allclose(re[1, 2], rt[rel2id[201]])
    assert np.allclose(np.asarray(special_tokens_embed[no_nodes + 0]["embed"])[0], st[0])
    assert np.allclose(np.asarray(special_tokens_embed[no_nodes + 1]["embed"])[0], st[1])

    # --- also exercise the batched HBM-gather fallback path (huge-table path) ---
    test_list = [3, -1, 0, 13, 7, -1, 1, 2]
    dma_out = np.asarray(
        _masked_gather_dma(enc.gather_table, jnp.array(test_list, jnp.int32)))
    full = np.asarray(enc.gather_table)
    for j, i in enumerate(test_list):
        if i < 0:
            assert np.allclose(dma_out[j], 0.0)
        else:
            assert np.allclose(dma_out[j], full[i])

    print("KERNEL_OK")
</pallas_src>

<mosaic_0001>
module attributes {stable_mosaic.version = 11 : i64} {
  func.func @_resident_gather_kernel(%arg0: i32, %arg1: memref<24xi32, #tpu.memory_space<smem>>, %arg2: memref<14x128xf32, #tpu.memory_space<vmem>>, %arg3: memref<24x128xf32, #tpu.memory_space<vmem>>) attributes {dimension_semantics = [#tpu.dimension_semantics<parallel>], iteration_bounds = array<i64: 1>, scalar_prefetch = 1 : i64, scratch_operands = 0 : i64, tpu.core_type = #tpu.core_type<tc>, window_params = [{pipeline_mode = #tpu.pipeline_mode<synchronous>, transform_indices = @transform_0, window_bounds = array<i64: 14, 128>}, {transform_indices = @transform_1, window_bounds = array<i64: 24, 128>}]} {
    %c24_i32 = arith.constant 24 : i32
    %0 = arith.muli %arg0, %c24_i32 : i32
    %1 = tpu.iota {dimensions = array<i32: 0>} : vector<8x128xi32>
    %cst = arith.constant 0.000000e+00 : f32
    %2 = vector.broadcast %cst : f32 to vector<8x128xf32>
    %c0_i32 = arith.constant 0 : i32
    %c8_i32 = arith.constant 8 : i32
    %3 = arith.muli %c0_i32, %c8_i32 : i32
    %4 = tpu.assume_multiple %3, 8 : i32
    %5 = arith.addi %0, %4 : i32
    %c0_i32_0 = arith.constant 0 : i32
    %6 = arith.addi %5, %c0_i32_0 : i32
    %7 = arith.index_cast %6 : i32 to index
    %8 = memref.load %arg1[%7] : memref<24xi32, #tpu.memory_space<smem>>
    %c0_i32_1 = arith.constant 0 : i32
    %9 = arith.maxsi %8, %c0_i32_1 : i32
    %10 = arith.index_cast %9 : i32 to index
    %c0 = arith.constant 0 : index
    %11 = vector.load %arg2[%10, %c0] : memref<14x128xf32, #tpu.memory_space<vmem>>, vector<1x128xf32>
    %c0_i32_2 = arith.constant 0 : i32
    %12 = vector.broadcast %c0_i32_2 : i32 to vector<8x128xi32>
    %13 = arith.cmpi eq, %1, %12 : vector<8x128xi32>
    %c0_i32_3 = arith.constant 0 : i32
    %14 = arith.cmpi sge, %8, %c0_i32_3 : i32
    %15 = vector.broadcast %14 : i1 to vector<8x128xi1>
    %16 = arith.andi %13, %15 : vector<8x128xi1>
    %17 = vector.shape_cast %11 : vector<1x128xf32> to vector<1x128xf32>
    %18 = vector.broadcast %17 : vector<1x128xf32> to vector<8x128xf32>
    %19 = arith.select %16, %18, %2 : vector<8x128xi1>, vector<8x128xf32>
    %20 = arith.addi %0, %4 : i32
    %c1_i32 = arith.constant 1 : i32
    %21 = arith.addi %20, %c1_i32 : i32
    %22 = arith.index_cast %21 : i32 to index
    %23 = memref.load %arg1[%22] : memref<24xi32, #tpu.memory_space<smem>>
    %c0_i32_4 = arith.constant 0 : i32
    %24 = arith.maxsi %23, %c0_i32_4 : i32
    %25 = arith.index_cast %24 : i32 to index
    %c0_5 = arith.constant 0 : index
    %26 = vector.load %arg2[%25, %c0_5] : memref<14x128xf32, #tpu.memory_space<vmem>>, vector<1x128xf32>
    %c1_i32_6 = arith.constant 1 : i32
    %27 = vector.broadcast %c1_i32_6 : i32 to vector<8x128xi32>
    %28 = arith.cmpi eq, %1, %27 : vector<8x128xi32>
    %c0_i32_7 = arith.constant 0 : i32
    %29 = arith.cmpi sge, %23, %c0_i32_7 : i32
    %30 = vector.broadcast %29 : i1 to vector<8x128xi1>
    %31 = arith.andi %28, %30 : vector<8x128xi1>
    %32 = vector.shape_cast %26 : vector<1x128xf32> to vector<1x128xf32>
    %33 = vector.broadcast %32 : vector<1x128xf32> to vector<8x128xf32>
    %34 = arith.select %31, %33, %19 : vector<8x128xi1>, vector<8x128xf32>
    %35 = arith.addi %0, %4 : i32
    %c2_i32 = arith.constant 2 : i32
    %36 = arith.addi %35, %c2_i32 : i32
    %37 = arith.index_cast %36 : i32 to index
    %38 = memref.load %arg1[%37] : memref<24xi32, #tpu.memory_space<smem>>
    %c0_i32_8 = arith.constant 0 : i32
    %39 = arith.maxsi %38, %c0_i32_8 : i32
    %40 = arith.index_cast %39 : i32 to index
    %c0_9 = arith.constant 0 : index
    %41 = vector.load %arg2[%40, %c0_9] : memref<14x128xf32, #tpu.memory_space<vmem>>, vector<1x128xf32>
    %c2_i32_10 = arith.constant 2 : i32
    %42 = vector.broadcast %c2_i32_10 : i32 to vector<8x128xi32>
    %43 = arith.cmpi eq, %1, %42 : vector<8x128xi32>
    %c0_i32_11 = arith.constant 0 : i32
    %44 = arith.cmpi sge, %38, %c0_i32_11 : i32
    %45 = vector.broadcast %44 : i1 to vector<8x128xi1>
    %46 = arith.andi %43, %45 : vector<8x128xi1>
    %47 = vector.shape_cast %41 : vector<1x128xf32> to vector<1x128xf32>
    %48 = vector.broadcast %47 : vector<1x128xf32> to vector<8x128xf32>
    %49 = arith.select %46, %48, %34 : vector<8x128xi1>, vector<8x128xf32>
    %50 = arith.addi %0, %4 : i32
    %c3_i32 = arith.constant 3 : i32
    %51 = arith.addi %50, %c3_i32 : i32
    %52 = arith.index_cast %51 : i32 to index
    %53 = memref.load %arg1[%52] : memref<24xi32, #tpu.memory_space<smem>>
    %c0_i32_12 = arith.constant 0 : i32
    %54 = arith.maxsi %53, %c0_i32_12 : i32
    %55 = arith.index_cast %54 : i32 to index
    %c0_13 = arith.constant 0 : index
    %56 = vector.load %arg2[%55, %c0_13] : memref<14x128xf32, #tpu.memory_space<vmem>>, vector<1x128xf32>
    %c3_i32_14 = arith.constant 3 : i32
    %57 = vector.broadcast %c3_i32_14 : i32 to vector<8x128xi32>
    %58 = arith.cmpi eq, %1, %57 : vector<8x128xi32>
    %c0_i32_15 = arith.constant 0 : i32
    %59 = arith.cmpi sge, %53, %c0_i32_15 : i32
    %60 = vector.broadcast %59 : i1 to vector<8x128xi1>
    %61 = arith.andi %58, %60 : vector<8x128xi1>
    %62 = vector.shape_cast %56 : vector<1x128xf32> to vector<1x128xf32>
    %63 = vector.broadcast %62 : vector<1x128xf32> to vector<8x128xf32>
    %64 = arith.select %61, %63, %49 : vector<8x128xi1>, vector<8x128xf32>
    %65 = arith.addi %0, %4 : i32
    %c4_i32 = arith.constant 4 : i32
    %66 = arith.addi %65, %c4_i32 : i32
    %67 = arith.index_cast %66 : i32 to index
    %68 = memref.load %arg1[%67] : memref<24xi32, #tpu.memory_space<smem>>
    %c0_i32_16 = arith.constant 0 : i32
    %69 = arith.maxsi %68, %c0_i32_16 : i32
    %70 = arith.index_cast %69 : i32 to index
    %c0_17 = arith.constant 0 : index
    %71 = vector.load %arg2[%70, %c0_17] : memref<14x128xf32, #tpu.memory_space<vmem>>, vector<1x128xf32>
    %c4_i32_18 = arith.constant 4 : i32
    %72 = vector.broadcast %c4_i32_18 : i32 to vector<8x128xi32>
    %73 = arith.cmpi eq, %1, %72 : vector<8x128xi32>
    %c0_i32_19 = arith.constant 0 : i32
    %74 = arith.cmpi sge, %68, %c0_i32_19 : i32
    %75 = vector.broadcast %74 : i1 to vector<8x128xi1>
    %76 = arith.andi %73, %75 : vector<8x128xi1>
    %77 = vector.shape_cast %71 : vector<1x128xf32> to vector<1x128xf32>
    %78 = vector.broadcast %77 : vector<1x128xf32> to vector<8x128xf32>
    %79 = arith.select %76, %78, %64 : vector<8x128xi1>, vector<8x128xf32>
    %80 = arith.addi %0, %4 : i32
    %c5_i32 = arith.constant 5 : i32
    %81 = arith.addi %80, %c5_i32 : i32
    %82 = arith.index_cast %81 : i32 to index
    %83 = memref.load %arg1[%82] : memref<24xi32, #tpu.memory_space<smem>>
    %c0_i32_20 = arith.constant 0 : i32
    %84 = arith.maxsi %83, %c0_i32_20 : i32
    %85 = arith.index_cast %84 : i32 to index
    %c0_21 = arith.constant 0 : index
    %86 = vector.load %arg2[%85, %c0_21] : memref<14x128xf32, #tpu.memory_space<vmem>>, vector<1x128xf32>
    %c5_i32_22 = arith.constant 5 : i32
    %87 = vector.broadcast %c5_i32_22 : i32 to vector<8x128xi32>
    %88 = arith.cmpi eq, %1, %87 : vector<8x128xi32>
    %c0_i32_23 = arith.constant 0 : i32
    %89 = arith.cmpi sge, %83, %c0_i32_23 : i32
    %90 = vector.broadcast %89 : i1 to vector<8x128xi1>
    %91 = arith.andi %88, %90 : vector<8x128xi1>
    %92 = vector.shape_cast %86 : vector<1x128xf32> to vector<1x128xf32>
    %93 = vector.broadcast %92 : vector<1x128xf32> to vector<8x128xf32>
    %94 = arith.select %91, %93, %79 : vector<8x128xi1>, vector<8x128xf32>
    %95 = arith.addi %0, %4 : i32
    %c6_i32 = arith.constant 6 : i32
    %96 = arith.addi %95, %c6_i32 : i32
    %97 = arith.index_cast %96 : i32 to index
    %98 = memref.load %arg1[%97] : memref<24xi32, #tpu.memory_space<smem>>
    %c0_i32_24 = arith.constant 0 : i32
    %99 = arith.maxsi %98, %c0_i32_24 : i32
    %100 = arith.index_cast %99 : i32 to index
    %c0_25 = arith.constant 0 : index
    %101 = vector.load %arg2[%100, %c0_25] : memref<14x128xf32, #tpu.memory_space<vmem>>, vector<1x128xf32>
    %c6_i32_26 = arith.constant 6 : i32
    %102 = vector.broadcast %c6_i32_26 : i32 to vector<8x128xi32>
    %103 = arith.cmpi eq, %1, %102 : vector<8x128xi32>
    %c0_i32_27 = arith.constant 0 : i32
    %104 = arith.cmpi sge, %98, %c0_i32_27 : i32
    %105 = vector.broadcast %104 : i1 to vector<8x128xi1>
    %106 = arith.andi %103, %105 : vector<8x128xi1>
    %107 = vector.shape_cast %101 : vector<1x128xf32> to vector<1x128xf32>
    %108 = vector.broadcast %107 : vector<1x128xf32> to vector<8x128xf32>
    %109 = arith.select %106, %108, %94 : vector<8x128xi1>, vector<8x128xf32>
    %110 = arith.addi %0, %4 : i32
    %c7_i32 = arith.constant 7 : i32
    %111 = arith.addi %110, %c7_i32 : i32
    %112 = arith.index_cast %111 : i32 to index
    %113 = memref.load %arg1[%112] : memref<24xi32, #tpu.memory_space<smem>>
    %c0_i32_28 = arith.constant 0 : i32
    %114 = arith.maxsi %113, %c0_i32_28 : i32
    %115 = arith.index_cast %114 : i32 to index
    %c0_29 = arith.constant 0 : index
    %116 = vector.load %arg2[%115, %c0_29] : memref<14x128xf32, #tpu.memory_space<vmem>>, vector<1x128xf32>
    %c7_i32_30 = arith.constant 7 : i32
    %117 = vector.broadcast %c7_i32_30 : i32 to vector<8x128xi32>
    %118 = arith.cmpi eq, %1, %117 : vector<8x128xi32>
    %c0_i32_31 = arith.constant 0 : i32
    %119 = arith.cmpi sge, %113, %c0_i32_31 : i32
    %120 = vector.broadcast %119 : i1 to vector<8x128xi1>
    %121 = arith.andi %118, %120 : vector<8x128xi1>
    %122 = vector.shape_cast %116 : vector<1x128xf32> to vector<1x128xf32>
    %123 = vector.broadcast %122 : vector<1x128xf32> to vector<8x128xf32>
    %124 = arith.select %121, %123, %109 : vector<8x128xi1>, vector<8x128xf32>
    %125 = arith.index_cast %4 : i32 to index
    %c0_32 = arith.constant 0 : index
    %126 = vector.load %arg3[%125, %c0_32] : memref<24x128xf32, #tpu.memory_space<vmem>>, vector<8x128xf32>
    tpu.vector_store %arg3[%125, %c0_32], %124 {strides = array<i32>} : memref<24x128xf32, #tpu.memory_space<vmem>>, vector<8x128xf32>,
    %c1_i32_33 = arith.constant 1 : i32
    %c8_i32_34 = arith.constant 8 : i32
    %127 = arith.muli %c1_i32_33, %c8_i32_34 : i32
    %128 = tpu.assume_multiple %127, 8 : i32
    %129 = arith.addi %0, %128 : i32
    %c0_i32_35 = arith.constant 0 : i32
    %130 = arith.addi %129, %c0_i32_35 : i32
    %131 = arith.index_cast %130 : i32 to index
    %132 = memref.load %arg1[%131] : memref<24xi32, #tpu.memory_space<smem>>
    %c0_i32_36 = arith.constant 0 : i32
    %133 = arith.maxsi %132, %c0_i32_36 : i32
    %134 = arith.index_cast %133 : i32 to index
    %c0_37 = arith.constant 0 : index
    %135 = vector.load %arg2[%134, %c0_37] : memref<14x128xf32, #tpu.memory_space<vmem>>, vector<1x128xf32>
    %c0_i32_38 = arith.constant 0 : i32
    %136 = vector.broadcast %c0_i32_38 : i32 to vector<8x128xi32>
    %137 = arith.cmpi eq, %1, %136 : vector<8x128xi32>
    %c0_i32_39 = arith.constant 0 : i32
    %138 = arith.cmpi sge, %132, %c0_i32_39 : i32
    %139 = vector.broadcast %138 : i1 to vector<8x128xi1>
    %140 = arith.andi %137, %139 : vector<8x128xi1>
    %141 = vector.shape_cast %135 : vector<1x128xf32> to vector<1x128xf32>
    %142 = vector.broadcast %141 : vector<1x128xf32> to vector<8x128xf32>
    %143 = arith.select %140, %142, %2 : vector<8x128xi1>, vector<8x128xf32>
    %144 = arith.addi %0, %128 : i32
    %c1_i32_40 = arith.constant 1 : i32
    %145 = arith.addi %144, %c1_i32_40 : i32
    %146 = arith.index_cast %145 : i32 to index
    %147 = memref.load %arg1[%146] : memref<24xi32, #tpu.memory_space<smem>>
    %c0_i32_41 = arith.constant 0 : i32
    %148 = arith.maxsi %147, %c0_i32_41 : i32
    %149 = arith.index_cast %148 : i32 to index
    %c0_42 = arith.constant 0 : index
    %150 = vector.load %arg2[%149, %c0_42] : memref<14x128xf32, #tpu.memory_space<vmem>>, vector<1x128xf32>
    %c1_i32_43 = arith.constant 1 : i32
    %151 = vector.broadcast %c1_i32_43 : i32 to vector<8x128xi32>
    %152 = arith.cmpi eq, %1, %151 : vector<8x128xi32>
    %c0_i32_44 = arith.constant 0 : i32
    %153 = arith.cmpi sge, %147, %c0_i32_44 : i32
    %154 = vector.broadcast %153 : i1 to vector<8x128xi1>
    %155 = arith.andi %152, %154 : vector<8x128xi1>
    %156 = vector.shape_cast %150 : vector<1x128xf32> to vector<1x128xf32>
    %157 = vector.broadcast %156 : vector<1x128xf32> to vector<8x128xf32>
    %158 = arith.select %155, %157, %143 : vector<8x128xi1>, vector<8x128xf32>
    %159 = arith.addi %0, %128 : i32
    %c2_i32_45 = arith.constant 2 : i32
    %160 = arith.addi %159, %c2_i32_45 : i32
    %161 = arith.index_cast %160 : i32 to index
    %162 = memref.load %arg1[%161] : memref<24xi32, #tpu.memory_space<smem>>
    %c0_i32_46 = arith.constant 0 : i32
    %163 = arith.maxsi %162, %c0_i32_46 : i32
    %164 = arith.index_cast %163 : i32 to index
    %c0_47 = arith.constant 0 : index
    %165 = vector.load %arg2[%164, %c0_47] : memref<14x128xf32, #tpu.memory_space<vmem>>, vector<1x128xf32>
    %c2_i32_48 = arith.constant 2 : i32
    %166 = vector.broadcast %c2_i32_48 : i32 to vector<8x128xi32>
    %167 = arith.cmpi eq, %1, %166 : vector<8x128xi32>
    %c0_i32_49 = arith.constant 0 : i32
    %168 = arith.cmpi sge, %162, %c0_i32_49 : i32
    %169 = vector.broadcast %168 : i1 to vector<8x128xi1>
    %170 = arith.andi %167, %169 : vector<8x128xi1>
    %171 = vector.shape_cast %165 : vector<1x128xf32> to vector<1x128xf32>
    %172 = vector.broadcast %171 : vector<1x128xf32> to vector<8x128xf32>
    %173 = arith.select %170, %172, %158 : vector<8x128xi1>, vector<8x128xf32>
    %174 = arith.addi %0, %128 : i32
    %c3_i32_50 = arith.constant 3 : i32
    %175 = arith.addi %174, %c3_i32_50 : i32
    %176 = arith.index_cast %175 : i32 to index
    %177 = memref.load %arg1[%176] : memref<24xi32, #tpu.memory_space<smem>>
    %c0_i32_51 = arith.constant 0 : i32
    %178 = arith.maxsi %177, %c0_i32_51 : i32
    %179 = arith.index_cast %178 : i32 to index
    %c0_52 = arith.constant 0 : index
    %180 = vector.load %arg2[%179, %c0_52] : memref<14x128xf32, #tpu.memory_space<vmem>>, vector<1x128xf32>
    %c3_i32_53 = arith.constant 3 : i32
    %181 = vector.broadcast %c3_i32_53 : i32 to vector<8x128xi32>
    %182 = arith.cmpi eq, %1, %181 : vector<8x128xi32>
    %c0_i32_54 = arith.constant 0 : i32
    %183 = arith.cmpi sge, %177, %c0_i32_54 : i32
    %184 = vector.broadcast %183 : i1 to vector<8x128xi1>
    %185 = arith.andi %182, %184 : vector<8x128xi1>
    %186 = vector.shape_cast %180 : vector<1x128xf32> to vector<1x128xf32>
    %187 = vector.broadcast %186 : vector<1x128xf32> to vector<8x128xf32>
    %188 = arith.select %185, %187, %173 : vector<8x128xi1>, vector<8x128xf32>
    %189 = arith.addi %0, %128 : i32
    %c4_i32_55 = arith.constant 4 : i32
    %190 = arith.addi %189, %c4_i32_55 : i32
    %191 = arith.index_cast %190 : i32 to index
    %192 = memref.load %arg1[%191] : memref<24xi32, #tpu.memory_space<smem>>
    %c0_i32_56 = arith.constant 0 : i32
    %193 = arith.maxsi %192, %c0_i32_56 : i32
    %194 = arith.index_cast %193 : i32 to index
    %c0_57 = arith.constant 0 : index
    %195 = vector.load %arg2[%194, %c0_57] : memref<14x128xf32, #tpu.memory_space<vmem>>, vector<1x128xf32>
    %c4_i32_58 = arith.constant 4 : i32
    %196 = vector.broadcast %c4_i32_58 : i32 to vector<8x128xi32>
    %197 = arith.cmpi eq, %1, %196 : vector<8x128xi32>
    %c0_i32_59 = arith.constant 0 : i32
    %198 = arith.cmpi sge, %192, %c0_i32_59 : i32
    %199 = vector.broadcast %198 : i1 to vector<8x128xi1>
    %200 = arith.andi %197, %199 : vector<8x128xi1>
    %201 = vector.shape_cast %195 : vector<1x128xf32> to vector<1x128xf32>
    %202 = vector.broadcast %201 : vector<1x128xf32> to vector<8x128xf32>
    %203 = arith.select %200, %202, %188 : vector<8x128xi1>, vector<8x128xf32>
    %204 = arith.addi %0, %128 : i32
    %c5_i32_60 = arith.constant 5 : i32
    %205 = arith.addi %204, %c5_i32_60 : i32
    %206 = arith.index_cast %205 : i32 to index
    %207 = memref.load %arg1[%206] : memref<24xi32, #tpu.memory_space<smem>>
    %c0_i32_61 = arith.constant 0 : i32
    %208 = arith.maxsi %207, %c0_i32_61 : i32
    %209 = arith.index_cast %208 : i32 to index
    %c0_62 = arith.constant 0 : index
    %210 = vector.load %arg2[%209, %c0_62] : memref<14x128xf32, #tpu.memory_space<vmem>>, vector<1x128xf32>
    %c5_i32_63 = arith.constant 5 : i32
    %211 = vector.broadcast %c5_i32_63 : i32 to vector<8x128xi32>
    %212 = arith.cmpi eq, %1, %211 : vector<8x128xi32>
    %c0_i32_64 = arith.constant 0 : i32
    %213 = arith.cmpi sge, %207, %c0_i32_64 : i32
    %214 = vector.broadcast %213 : i1 to vector<8x128xi1>
    %215 = arith.andi %212, %214 : vector<8x128xi1>
    %216 = vector.shape_cast %210 : vector<1x128xf32> to vector<1x128xf32>
    %217 = vector.broadcast %216 : vector<1x128xf32> to vector<8x128xf32>
    %218 = arith.select %215, %217, %203 : vector<8x128xi1>, vector<8x128xf32>
    %219 = arith.addi %0, %128 : i32
    %c6_i32_65 = arith.constant 6 : i32
    %220 = arith.addi %219, %c6_i32_65 : i32
    %221 = arith.index_cast %220 : i32 to index
    %222 = memref.load %arg1[%221] : memref<24xi32, #tpu.memory_space<smem>>
    %c0_i32_66 = arith.constant 0 : i32
    %223 = arith.maxsi %222, %c0_i32_66 : i32
    %224 = arith.index_cast %223 : i32 to index
    %c0_67 = arith.constant 0 : index
    %225 = vector.load %arg2[%224, %c0_67] : memref<14x128xf32, #tpu.memory_space<vmem>>, vector<1x128xf32>
    %c6_i32_68 = arith.constant 6 : i32
    %226 = vector.broadcast %c6_i32_68 : i32 to vector<8x128xi32>
    %227 = arith.cmpi eq, %1, %226 : vector<8x128xi32>
    %c0_i32_69 = arith.constant 0 : i32
    %228 = arith.cmpi sge, %222, %c0_i32_69 : i32
    %229 = vector.broadcast %228 : i1 to vector<8x128xi1>
    %230 = arith.andi %227, %229 : vector<8x128xi1>
    %231 = vector.shape_cast %225 : vector<1x128xf32> to vector<1x128xf32>
    %232 = vector.broadcast %231 : vector<1x128xf32> to vector<8x128xf32>
    %233 = arith.select %230, %232, %218 : vector<8x128xi1>, vector<8x128xf32>
    %234 = arith.addi %0, %128 : i32
    %c7_i32_70 = arith.constant 7 : i32
    %235 = arith.addi %234, %c7_i32_70 : i32
    %236 = arith.index_cast %235 : i32 to index
    %237 = memref.load %arg1[%236] : memref<24xi32, #tpu.memory_space<smem>>
    %c0_i32_71 = arith.constant 0 : i32
    %238 = arith.maxsi %237, %c0_i32_71 : i32
    %239 = arith.index_cast %238 : i32 to index
    %c0_72 = arith.constant 0 : index
    %240 = vector.load %arg2[%239, %c0_72] : memref<14x128xf32, #tpu.memory_space<vmem>>, vector<1x128xf32>
    %c7_i32_73 = arith.constant 7 : i32
    %241 = vector.broadcast %c7_i32_73 : i32 to vector<8x128xi32>
    %242 = arith.cmpi eq, %1, %241 : vector<8x128xi32>
    %c0_i32_74 = arith.constant 0 : i32
    %243 = arith.cmpi sge, %237, %c0_i32_74 : i32
    %244 = vector.broadcast %243 : i1 to vector<8x128xi1>
    %245 = arith.andi %242, %244 : vector<8x128xi1>
    %246 = vector.shape_cast %240 : vector<1x128xf32> to vector<1x128xf32>
    %247 = vector.broadcast %246 : vector<1x128xf32> to vector<8x128xf32>
    %248 = arith.select %245, %247, %233 : vector<8x128xi1>, vector<8x128xf32>
    %249 = arith.index_cast %128 : i32 to index
    %c0_75 = arith.constant 0 : index
    %250 = vector.load %arg3[%249, %c0_75] : memref<24x128xf32, #tpu.memory_space<vmem>>, vector<8x128xf32>
    tpu.vector_store %arg3[%249, %c0_75], %248 {strides = array<i32>} : memref<24x128xf32, #tpu.memory_space<vmem>>, vector<8x128xf32>,
    %c2_i32_76 = arith.constant 2 : i32
    %c8_i32_77 = arith.constant 8 : i32
    %251 = arith.muli %c2_i32_76, %c8_i32_77 : i32
    %252 = tpu.assume_multiple %251, 8 : i32
    %253 = arith.addi %0, %252 : i32
    %c0_i32_78 = arith.constant 0 : i32
    %254 = arith.addi %253, %c0_i32_78 : i32
    %255 = arith.index_cast %254 : i32 to index
    %256 = memref.load %arg1[%255] : memref<24xi32, #tpu.memory_space<smem>>
    %c0_i32_79 = arith.constant 0 : i32
    %257 = arith.maxsi %256, %c0_i32_79 : i32
    %258 = arith.index_cast %257 : i32 to index
    %c0_80 = arith.constant 0 : index
    %259 = vector.load %arg2[%258, %c0_80] : memref<14x128xf32, #tpu.memory_space<vmem>>, vector<1x128xf32>
    %c0_i32_81 = arith.constant 0 : i32
    %260 = vector.broadcast %c0_i32_81 : i32 to vector<8x128xi32>
    %261 = arith.cmpi eq, %1, %260 : vector<8x128xi32>
    %c0_i32_82 = arith.constant 0 : i32
    %262 = arith.cmpi sge, %256, %c0_i32_82 : i32
    %263 = vector.broadcast %262 : i1 to vector<8x128xi1>
    %264 = arith.andi %261, %263 : vector<8x128xi1>
    %265 = vector.shape_cast %259 : vector<1x128xf32> to vector<1x128xf32>
    %266 = vector.broadcast %265 : vector<1x128xf32> to vector<8x128xf32>
    %267 = arith.select %264, %266, %2 : vector<8x128xi1>, vector<8x128xf32>
    %268 = arith.addi %0, %252 : i32
    %c1_i32_83 = arith.constant 1 : i32
    %269 = arith.addi %268, %c1_i32_83 : i32
    %270 = arith.index_cast %269 : i32 to index
    %271 = memref.load %arg1[%270] : memref<24xi32, #tpu.memory_space<smem>>
    %c0_i32_84 = arith.constant 0 : i32
    %272 = arith.maxsi %271, %c0_i32_84 : i32
    %273 = arith.index_cast %272 : i32 to index
    %c0_85 = arith.constant 0 : index
    %274 = vector.load %arg2[%273, %c0_85] : memref<14x128xf32, #tpu.memory_space<vmem>>, vector<1x128xf32>
    %c1_i32_86 = arith.constant 1 : i32
    %275 = vector.broadcast %c1_i32_86 : i32 to vector<8x128xi32>
    %276 = arith.cmpi eq, %1, %275 : vector<8x128xi32>
    %c0_i32_87 = arith.constant 0 : i32
    %277 = arith.cmpi sge, %271, %c0_i32_87 : i32
    %278 = vector.broadcast %277 : i1 to vector<8x128xi1>
    %279 = arith.andi %276, %278 : vector<8x128xi1>
    %280 = vector.shape_cast %274 : vector<1x128xf32> to vector<1x128xf32>
    %281 = vector.broadcast %280 : vector<1x128xf32> to vector<8x128xf32>
    %282 = arith.select %279, %281, %267 : vector<8x128xi1>, vector<8x128xf32>
    %283 = arith.addi %0, %252 : i32
    %c2_i32_88 = arith.constant 2 : i32
    %284 = arith.addi %283, %c2_i32_88 : i32
    %285 = arith.index_cast %284 : i32 to index
    %286 = memref.load %arg1[%285] : memref<24xi32, #tpu.memory_space<smem>>
    %c0_i32_89 = arith.constant 0 : i32
    %287 = arith.maxsi %286, %c0_i32_89 : i32
    %288 = arith.index_cast %287 : i32 to index
    %c0_90 = arith.constant 0 : index
    %289 = vector.load %arg2[%288, %c0_90] : memref<14x128xf32, #tpu.memory_space<vmem>>, vector<1x128xf32>
    %c2_i32_91 = arith.constant 2 : i32
    %290 = vector.broadcast %c2_i32_91 : i32 to vector<8x128xi32>
    %291 = arith.cmpi eq, %1, %290 : vector<8x128xi32>
    %c0_i32_92 = arith.constant 0 : i32
    %292 = arith.cmpi sge, %286, %c0_i32_92 : i32
    %293 = vector.broadcast %292 : i1 to vector<8x128xi1>
    %294 = arith.andi %291, %293 : vector<8x128xi1>
    %295 = vector.shape_cast %289 : vector<1x128xf32> to vector<1x128xf32>
    %296 = vector.broadcast %295 : vector<1x128xf32> to vector<8x128xf32>
    %297 = arith.select %294, %296, %282 : vector<8x128xi1>, vector<8x128xf32>
    %298 = arith.addi %0, %252 : i32
    %c3_i32_93 = arith.constant 3 : i32
    %299 = arith.addi %298, %c3_i32_93 : i32
    %300 = arith.index_cast %299 : i32 to index
    %301 = memref.load %arg1[%300] : memref<24xi32, #tpu.memory_space<smem>>
    %c0_i32_94 = arith.constant 0 : i32
    %302 = arith.maxsi %301, %c0_i32_94 : i32
    %303 = arith.index_cast %302 : i32 to index
    %c0_95 = arith.constant 0 : index
    %304 = vector.load %arg2[%303, %c0_95] : memref<14x128xf32, #tpu.memory_space<vmem>>, vector<1x128xf32>
    %c3_i32_96 = arith.constant 3 : i32
    %305 = vector.broadcast %c3_i32_96 : i32 to vector<8x128xi32>
    %306 = arith.cmpi eq, %1, %305 : vector<8x128xi32>
    %c0_i32_97 = arith.constant 0 : i32
    %307 = arith.cmpi sge, %301, %c0_i32_97 : i32
    %308 = vector.broadcast %307 : i1 to vector<8x128xi1>
    %309 = arith.andi %306, %308 : vector<8x128xi1>
    %310 = vector.shape_cast %304 : vector<1x128xf32> to vector<1x128xf32>
    %311 = vector.broadcast %310 : vector<1x128xf32> to vector<8x128xf32>
    %312 = arith.select %309, %311, %297 : vector<8x128xi1>, vector<8x128xf32>
    %313 = arith.addi %0, %252 : i32
    %c4_i32_98 = arith.constant 4 : i32
    %314 = arith.addi %313, %c4_i32_98 : i32
    %315 = arith.index_cast %314 : i32 to index
    %316 = memref.load %arg1[%315] : memref<24xi32, #tpu.memory_space<smem>>
    %c0_i32_99 = arith.constant 0 : i32
    %317 = arith.maxsi %316, %c0_i32_99 : i32
    %318 = arith.index_cast %317 : i32 to index
    %c0_100 = arith.constant 0 : index
    %319 = vector.load %arg2[%318, %c0_100] : memref<14x128xf32, #tpu.memory_space<vmem>>, vector<1x128xf32>
    %c4_i32_101 = arith.constant 4 : i32
    %320 = vector.broadcast %c4_i32_101 : i32 to vector<8x128xi32>
    %321 = arith.cmpi eq, %1, %320 : vector<8x128xi32>
    %c0_i32_102 = arith.constant 0 : i32
    %322 = arith.cmpi sge, %316, %c0_i32_102 : i32
    %323 = vector.broadcast %322 : i1 to vector<8x128xi1>
    %324 = arith.andi %321, %323 : vector<8x128xi1>
    %325 = vector.shape_cast %319 : vector<1x128xf32> to vector<1x128xf32>
    %326 = vector.broadcast %325 : vector<1x128xf32> to vector<8x128xf32>
    %327 = arith.select %324, %326, %312 : vector<8x128xi1>, vector<8x128xf32>
    %328 = arith.addi %0, %252 : i32
    %c5_i32_103 = arith.constant 5 : i32
    %329 = arith.addi %328, %c5_i32_103 : i32
    %330 = arith.index_cast %329 : i32 to index
    %331 = memref.load %arg1[%330] : memref<24xi32, #tpu.memory_space<smem>>
    %c0_i32_104 = arith.constant 0 : i32
    %332 = arith.maxsi %331, %c0_i32_104 : i32
    %333 = arith.index_cast %332 : i32 to index
    %c0_105 = arith.constant 0 : index
    %334 = vector.load %arg2[%333, %c0_105] : memref<14x128xf32, #tpu.memory_space<vmem>>, vector<1x128xf32>
    %c5_i32_106 = arith.constant 5 : i32
    %335 = vector.broadcast %c5_i32_106 : i32 to vector<8x128xi32>
    %336 = arith.cmpi eq, %1, %335 : vector<8x128xi32>
    %c0_i32_107 = arith.constant 0 : i32
    %337 = arith.cmpi sge, %331, %c0_i32_107 : i32
    %338 = vector.broadcast %337 : i1 to vector<8x128xi1>
    %339 = arith.andi %336, %338 : vector<8x128xi1>
    %340 = vector.shape_cast %334 : vector<1x128xf32> to vector<1x128xf32>
    %341 = vector.broadcast %340 : vector<1x128xf32> to vector<8x128xf32>
    %342 = arith.select %339, %341, %327 : vector<8x128xi1>, vector<8x128xf32>
    %343 = arith.addi %0, %252 : i32
    %c6_i32_108 = arith.constant 6 : i32
    %344 = arith.addi %343, %c6_i32_108 : i32
    %345 = arith.index_cast %344 : i32 to index
    %346 = memref.load %arg1[%345] : memref<24xi32, #tpu.memory_space<smem>>
    %c0_i32_109 = arith.constant 0 : i32
    %347 = arith.maxsi %346, %c0_i32_109 : i32
    %348 = arith.index_cast %347 : i32 to index
    %c0_110 = arith.constant 0 : index
    %349 = vector.load %arg2[%348, %c0_110] : memref<14x128xf32, #tpu.memory_space<vmem>>, vector<1x128xf32>
    %c6_i32_111 = arith.constant 6 : i32
    %350 = vector.broadcast %c6_i32_111 : i32 to vector<8x128xi32>
    %351 = arith.cmpi eq, %1, %350 : vector<8x128xi32>
    %c0_i32_112 = arith.constant 0 : i32
    %352 = arith.cmpi sge, %346, %c0_i32_112 : i32
    %353 = vector.broadcast %352 : i1 to vector<8x128xi1>
    %354 = arith.andi %351, %353 : vector<8x128xi1>
    %355 = vector.shape_cast %349 : vector<1x128xf32> to vector<1x128xf32>
    %356 = vector.broadcast %355 : vector<1x128xf32> to vector<8x128xf32>
    %357 = arith.select %354, %356, %342 : vector<8x128xi1>, vector<8x128xf32>
    %358 = arith.addi %0, %252 : i32
    %c7_i32_113 = arith.constant 7 : i32
    %359 = arith.addi %358, %c7_i32_113 : i32
    %360 = arith.index_cast %359 : i32 to index
    %361 = memref.load %arg1[%360] : memref<24xi32, #tpu.memory_space<smem>>
    %c0_i32_114 = arith.constant 0 : i32
    %362 = arith.maxsi %361, %c0_i32_114 : i32
    %363 = arith.index_cast %362 : i32 to index
    %c0_115 = arith.constant 0 : index
    %364 = vector.load %arg2[%363, %c0_115] : memref<14x128xf32, #tpu.memory_space<vmem>>, vector<1x128xf32>
    %c7_i32_116 = arith.constant 7 : i32
    %365 = vector.broadcast %c7_i32_116 : i32 to vector<8x128xi32>
    %366 = arith.cmpi eq, %1, %365 : vector<8x128xi32>
    %c0_i32_117 = arith.constant 0 : i32
    %367 = arith.cmpi sge, %361, %c0_i32_117 : i32
    %368 = vector.broadcast %367 : i1 to vector<8x128xi1>
    %369 = arith.andi %366, %368 : vector<8x128xi1>
    %370 = vector.shape_cast %364 : vector<1x128xf32> to vector<1x128xf32>
    %371 = vector.broadcast %370 : vector<1x128xf32> to vector<8x128xf32>
    %372 = arith.select %369, %371, %357 : vector<8x128xi1>, vector<8x128xf32>
    %373 = arith.index_cast %252 : i32 to index
    %c0_118 = arith.constant 0 : index
    %374 = vector.load %arg3[%373, %c0_118] : memref<24x128xf32, #tpu.memory_space<vmem>>, vector<8x128xf32>
    tpu.vector_store %arg3[%373, %c0_118], %372 {strides = array<i32>} : memref<24x128xf32, #tpu.memory_space<vmem>>, vector<8x128xf32>,
    %c3_i32_119 = arith.constant 3 : i32
    return
  }
  func.func @transform_0(%arg0: i32, %arg1: memref<24xi32, #tpu.memory_space<smem>>) -> (i32, i32) {
    %c0_i32 = arith.constant 0 : i32
    %c0_i32_0 = arith.constant 0 : i32
    %c0_i32_1 = arith.constant 0 : i32
    return %c0_i32, %c0_i32_0 : i32, i32
  }
  func.func @transform_1(%arg0: i32, %arg1: memref<24xi32, #tpu.memory_space<smem>>) -> (i32, i32) {
    %c0_i32 = arith.constant 0 : i32
    %c0_i32_0 = arith.constant 0 : i32
    return %arg0, %c0_i32 : i32, i32
  }
}

</mosaic_0001>

<llo_original>
// kernel: tpu_custom_call.1
$region0: #{tpu_custom_call.1}
  #allocation0 [shape = 'u32[]', space=smem, size = 0x4, offset = 0x4, fixed_abs, tag = 'smem constant byte address 0x4 - core index']
  #allocation1 [shape = 'u32[144,128]{1,0:T(1,128)}', space=vmem, size = 0x12000, scoped, tag = 'internal scratch']
  #allocation2 [shape = 's32[1]{0}', space=sflag, size = 0x4, scoped, tag = 'scoped memory for tpu_custom_call.1']
  #allocation3 [shape = 'u8[512]{0}', space=smem, size = 0x200, scoped, tag = 'prefetched SMEM operand 0']
  %s0 = inlined_call_operand.hbm [shape: s32[24], index: 0, kind: input, shape index: {}]
  %s1 = inlined_call_operand.hbm [shape: f32[14,128], index: 1, kind: input, shape index: {}]
  %s2 = inlined_call_operand.hbm [shape: f32[24,128], index: 2, kind: output, shape index: {}]
  %s3 = sld [smem:[#allocation0]]
  $region18: #{tpu_custom_call.1} parent=0
    _
  %s5 = ssub.s32 1, %s3
  %s6 = scalar_select 0, %s5, %s3
  %8 = dma.hbm_to_smem %s0, 16, [#allocation3], [#allocation2]
  %9 = dma.done [#allocation2], 16
  %10 = sfence
  $region1: #{tpu_custom_call.1} parent=0
    #allocation4 [shape = 'u8[8192]{0}', space=vmem, size = 0x2000, scoped, tag = 'input window, operand 1, single buffered']
    #allocation5 [shape = 's32[1]{0}', space=sflag, size = 0x4, scoped, tag = 'scoped memory for tpu_custom_call.1']
    #allocation6 [shape = 's32[1]{0}', space=sflag, size = 0x4, scoped, tag = 'scoped memory for tpu_custom_call.1']
    #allocation7 [shape = 'u8[12288]{0}', space=vmem, size = 0x3000, scoped, tag = 'output window, operand 0, single buffered']
    %11 = vsyncpa [#allocation5], 0
    %12 = vsyncpa [#allocation6], 0
    // Predicated region
    $region2: #{tpu_custom_call.1} parent=1 // pred_check
      _
    $region3: #{tpu_custom_call.1} parent=1 // pred_check_branch
      %14 = sbr.rel (0) target = $region5
    $region4: #{tpu_custom_call.1} parent=1 // pred_region
      %s16 = ssub.s32 256, 256
      %17 = vsyncadd [#allocation5], %s16
      %s18 = sshll.u32 [#allocation4], 4
      %s19 = int_to_ptr.vmem [resolvable:$true] %s18
      %24 = dma.hbm_to_vmem [thread:$0]  %s1, 256, %s19, [#allocation5], 128, 128, 8
    $region5: #{tpu_custom_call.1} parent=1 // pred_fallthru
      _
    // Predicated region
    $region6: #{tpu_custom_call.1} parent=1 // pred_check
      _
    $region7: #{tpu_custom_call.1} parent=1 // pred_check_branch
      %26 = sbr.rel (0) target = $region9
    $region8: #{tpu_custom_call.1} parent=1 // pred_region
      %27 = dma.done [#allocation5], 256
    $region9: #{tpu_custom_call.1} parent=1 // pred_fallthru
      _
    %s28 = smul.u32 0, 24
    %v29 = vlaneseq
    %v30 = vshrl.u32 %v29, 7
    %s31 = sadd.s32 %s28, 0
    %s32 = sld [smem:[#allocation3 + %s31]]
    %p33 = scmp.gt.s32.totalorder %s32, 0
    %s34 = scalar_select %p33, %s32, 0
    %s35 = scalar_lea.vmem [#allocation4], %s34
    %v36 = vld [vmem:[%s35] sm:$0x1]
    %vm37 = vcmp.eq.s32.totalorder %v30, 0
    %p38 = scmp.ge.s32.totalorder %s32, 0
    %s39 = scalar_select %p38, 1, 0
    %v40 = vstv %s39
    %vm41 = vcmp.eq.s32.totalorder %v40, 1
    %vm42 = vmand %vm37, %vm41
    %v43 = vlaneseq
    %v44 = vshrl.u32 %v43, 7
    %v45 = vsub.s32 0, %v44
    %v46 = vrot.slane %v36, %v45
    %v47 = vsel %vm42, %v46, 0.0
    %s48 = sadd.s32 %s31, 1
    %s49 = sld [smem:[#allocation3 + %s48]]
    %p50 = scmp.gt.s32.totalorder %s49, 0
    %s51 = scalar_select %p50, %s49, 0
    %s52 = scalar_lea.vmem [#allocation4], %s51
    %v53 = vld [vmem:[%s52] sm:$0x1]
    %vm54 = vcmp.eq.s32.totalorder %v30, 1
    %p55 = scmp.ge.s32.totalorder %s49, 0
    %s56 = scalar_select %p55, 1, 0
    %v57 = vstv %s56
    %vm58 = vcmp.eq.s32.totalorder %v57, 1
    %vm59 = vmand %vm54, %vm58
    %v60 = vlaneseq
    %v61 = vshrl.u32 %v60, 7
    %v62 = vsub.s32 0, %v61
    %v63 = vrot.slane %v53, %v62
    %v64 = vsel %vm59, %v63, %v47
    %s65 = sadd.s32 %s31, 2
    %s66 = sld [smem:[#allocation3 + %s65]]
    %p67 = scmp.gt.s32.totalorder %s66, 0
    %s68 = scalar_select %p67, %s66, 0
    %s69 = scalar_lea.vmem [#allocation4], %s68
    %v70 = vld [vmem:[%s69] sm:$0x1]
    %vm71 = vcmp.eq.s32.totalorder %v30, 2
    %p72 = scmp.ge.s32.totalorder %s66, 0
    %s73 = scalar_select %p72, 1, 0
    %v74 = vstv %s73
    %vm75 = vcmp.eq.s32.totalorder %v74, 1
    %vm76 = vmand %vm71, %vm75
    %v77 = vlaneseq
    %v78 = vshrl.u32 %v77, 7
    %v79 = vsub.s32 0, %v78
    %v80 = vrot.slane %v70, %v79
    %v81 = vsel %vm76, %v80, %v64
    %s82 = sadd.s32 %s31, 3
    %s83 = sld [smem:[#allocation3 + %s82]]
    %p84 = scmp.gt.s32.totalorder %s83, 0
    %s85 = scalar_select %p84, %s83, 0
    %s86 = scalar_lea.vmem [#allocation4], %s85
    %v87 = vld [vmem:[%s86] sm:$0x1]
    %vm88 = vcmp.eq.s32.totalorder %v30, 3
    %p89 = scmp.ge.s32.totalorder %s83, 0
    %s90 = scalar_select %p89, 1, 0
    %v91 = vstv %s90
    %vm92 = vcmp.eq.s32.totalorder %v91, 1
    %vm93 = vmand %vm88, %vm92
    %v94 = vlaneseq
    %v95 = vshrl.u32 %v94, 7
    %v96 = vsub.s32 0, %v95
    %v97 = vrot.slane %v87, %v96
    %v98 = vsel %vm93, %v97, %v81
    %s99 = sadd.s32 %s31, 4
    %s100 = sld [smem:[#allocation3 + %s99]]
    %p101 = scmp.gt.s32.totalorder %s100, 0
    %s102 = scalar_select %p101, %s100, 0
    %s103 = scalar_lea.vmem [#allocation4], %s102
    %v104 = vld [vmem:[%s103] sm:$0x1]
    %vm105 = vcmp.eq.s32.totalorder %v30, 4
    %p106 = scmp.ge.s32.totalorder %s100, 0
    %s107 = scalar_select %p106, 1, 0
    %v108 = vstv %s107
    %vm109 = vcmp.eq.s32.totalorder %v108, 1
    %vm110 = vmand %vm105, %vm109
    %v111 = vlaneseq
    %v112 = vshrl.u32 %v111, 7
    %v113 = vsub.s32 0, %v112
    %v114 = vrot.slane %v104, %v113
    %v115 = vsel %vm110, %v114, %v98
    %s116 = sadd.s32 %s31, 5
    %s117 = sld [smem:[#allocation3 + %s116]]
    %p118 = scmp.gt.s32.totalorder %s117, 0
    %s119 = scalar_select %p118, %s117, 0
    %s120 = scalar_lea.vmem [#allocation4], %s119
    %v121 = vld [vmem:[%s120] sm:$0x1]
    %vm122 = vcmp.eq.s32.totalorder %v30, 5
    %p123 = scmp.ge.s32.totalorder %s117, 0
    %s124 = scalar_select %p123, 1, 0
    %v125 = vstv %s124
    %vm126 = vcmp.eq.s32.totalorder %v125, 1
    %vm127 = vmand %vm122, %vm126
    %v128 = vlaneseq
    %v129 = vshrl.u32 %v128, 7
    %v130 = vsub.s32 0, %v129
    %v131 = vrot.slane %v121, %v130
    %v132 = vsel %vm127, %v131, %v115
    %s133 = sadd.s32 %s31, 6
    %s134 = sld [smem:[#allocation3 + %s133]]
    %p135 = scmp.gt.s32.totalorder %s134, 0
    %s136 = scalar_select %p135, %s134, 0
    %s137 = scalar_lea.vmem [#allocation4], %s136
    %v138 = vld [vmem:[%s137] sm:$0x1]
    %vm139 = vcmp.eq.s32.totalorder %v30, 6
    %p140 = scmp.ge.s32.totalorder %s134, 0
    %s141 = scalar_select %p140, 1, 0
    %v142 = vstv %s141
    %vm143 = vcmp.eq.s32.totalorder %v142, 1
    %vm144 = vmand %vm139, %vm143
    %v145 = vlaneseq
    %v146 = vshrl.u32 %v145, 7
    %v147 = vsub.s32 0, %v146
    %v148 = vrot.slane %v138, %v147
    %v149 = vsel %vm144, %v148, %v132
    %s150 = sadd.s32 %s31, 7
    %s151 = sld [smem:[#allocation3 + %s150]]
    %p152 = scmp.gt.s32.totalorder %s151, 0
    %s153 = scalar_select %p152, %s151, 0
    %s154 = scalar_lea.vmem [#allocation4], %s153
    %v155 = vld [vmem:[%s154] sm:$0x1]
    %vm156 = vcmp.eq.s32.totalorder %v30, 7
    %p157 = scmp.ge.s32.totalorder %s151, 0
    %s158 = scalar_select %p157, 1, 0
    %v159 = vstv %s158
    %vm160 = vcmp.eq.s32.totalorder %v159, 1
    %vm161 = vmand %vm156, %vm160
    %v162 = vlaneseq
    %v163 = vshrl.u32 %v162, 7
    %v164 = vsub.s32 0, %v163
    %v165 = vrot.slane %v155, %v164
    %v166 = vsel %vm161, %v165, %v149
    %167 = vst [vmem:[#allocation7] sm:$0xff] %v166
    %s168 = sadd.s32 %s28, 8
    %s169 = sld [smem:[#allocation3 + %s168]]
    %p170 = scmp.gt.s32.totalorder %s169, 0
    %s171 = scalar_select %p170, %s169, 0
    %s172 = scalar_lea.vmem [#allocation4], %s171
    %v173 = vld [vmem:[%s172] sm:$0x1]
    %p174 = scmp.ge.s32.totalorder %s169, 0
    %s175 = scalar_select %p174, 1, 0
    %v176 = vstv %s175
    %vm177 = vcmp.eq.s32.totalorder %v176, 1
    %vm178 = vmand %vm37, %vm177
    %v179 = vlaneseq
    %v180 = vshrl.u32 %v179, 7
    %v181 = vsub.s32 0, %v180
    %v182 = vrot.slane %v173, %v181
    %v183 = vsel %vm178, %v182, 0.0
    %s184 = sadd.s32 %s168, 1
    %s185 = sld [smem:[#allocation3 + %s184]]
    %p186 = scmp.gt.s32.totalorder %s185, 0
    %s187 = scalar_select %p186, %s185, 0
    %s188 = scalar_lea.vmem [#allocation4], %s187
    %v189 = vld [vmem:[%s188] sm:$0x1]
    %p190 = scmp.ge.s32.totalorder %s185, 0
    %s191 = scalar_select %p190, 1, 0
    %v192 = vstv %s191
    %vm193 = vcmp.eq.s32.totalorder %v192, 1
    %vm194 = vmand %vm54, %vm193
    %v195 = vlaneseq
    %v196 = vshrl.u32 %v195, 7
    %v197 = vsub.s32 0, %v196
    %v198 = vrot.slane %v189, %v197
    %v199 = vsel %vm194, %v198, %v183
    %s200 = sadd.s32 %s168, 2
    %s201 = sld [smem:[#allocation3 + %s200]]
    %p202 = scmp.gt.s32.totalorder %s201, 0
    %s203 = scalar_select %p202, %s201, 0
    %s204 = scalar_lea.vmem [#allocation4], %s203
    %v205 = vld [vmem:[%s204] sm:$0x1]
    %p206 = scmp.ge.s32.totalorder %s201, 0
    %s207 = scalar_select %p206, 1, 0
    %v208 = vstv %s207
    %vm209 = vcmp.eq.s32.totalorder %v208, 1
    %vm210 = vmand %vm71, %vm209
    %v211 = vlaneseq
    %v212 = vshrl.u32 %v211, 7
    %v213 = vsub.s32 0, %v212
    %v214 = vrot.slane %v205, %v213
    %v215 = vsel %vm210, %v214, %v199
    %s216 = sadd.s32 %s168, 3
    %s217 = sld [smem:[#allocation3 + %s216]]
    %p218 = scmp.gt.s32.totalorder %s217, 0
    %s219 = scalar_select %p218, %s217, 0
    %s220 = scalar_lea.vmem [#allocation4], %s219
    %v221 = vld [vmem:[%s220] sm:$0x1]
    %p222 = scmp.ge.s32.totalorder %s217, 0
    %s223 = scalar_select %p222, 1, 0
    %v224 = vstv %s223
    %vm225 = vcmp.eq.s32.totalorder %v224, 1
    %vm226 = vmand %vm88, %vm225
    %v227 = vlaneseq
    %v228 = vshrl.u32 %v227, 7
    %v229 = vsub.s32 0, %v228
    %v230 = vrot.slane %v221, %v229
    %v231 = vsel %vm226, %v230, %v215
    %s232 = sadd.s32 %s168, 4
    %s233 = sld [smem:[#allocation3 + %s232]]
    %p234 = scmp.gt.s32.totalorder %s233, 0
    %s235 = scalar_select %p234, %s233, 0
    %s236 = scalar_lea.vmem [#allocation4], %s235
    %v237 = vld [vmem:[%s236] sm:$0x1]
    %p238 = scmp.ge.s32.totalorder %s233, 0
    %s239 = scalar_select %p238, 1, 0
    %v240 = vstv %s239
    %vm241 = vcmp.eq.s32.totalorder %v240, 1
    %vm242 = vmand %vm105, %vm241
    %v243 = vlaneseq
    %v244 = vshrl.u32 %v243, 7
    %v245 = vsub.s32 0, %v244
    %v246 = vrot.slane %v237, %v245
    %v247 = vsel %vm242, %v246, %v231
    %s248 = sadd.s32 %s168, 5
    %s249 = sld [smem:[#allocation3 + %s248]]
    %p250 = scmp.gt.s32.totalorder %s249, 0
    %s251 = scalar_select %p250, %s249, 0
    %s252 = scalar_lea.vmem [#allocation4], %s251
    %v253 = vld [vmem:[%s252] sm:$0x1]
    %p254 = scmp.ge.s32.totalorder %s249, 0
    %s255 = scalar_select %p254, 1, 0
    %v256 = vstv %s255
    %vm257 = vcmp.eq.s32.totalorder %v256, 1
    %vm258 = vmand %vm122, %vm257
    %v259 = vlaneseq
    %v260 = vshrl.u32 %v259, 7
    %v261 = vsub.s32 0, %v260
    %v262 = vrot.slane %v253, %v261
    %v263 = vsel %vm258, %v262, %v247
    %s264 = sadd.s32 %s168, 6
    %s265 = sld [smem:[#allocation3 + %s264]]
    %p266 = scmp.gt.s32.totalorder %s265, 0
    %s267 = scalar_select %p266, %s265, 0
    %s268 = scalar_lea.vmem [#allocation4], %s267
    %v269 = vld [vmem:[%s268] sm:$0x1]
    %p270 = scmp.ge.s32.totalorder %s265, 0
    %s271 = scalar_select %p270, 1, 0
    %v272 = vstv %s271
    %vm273 = vcmp.eq.s32.totalorder %v272, 1
    %vm274 = vmand %vm139, %vm273
    %v275 = vlaneseq
    %v276 = vshrl.u32 %v275, 7
    %v277 = vsub.s32 0, %v276
    %v278 = vrot.slane %v269, %v277
    %v279 = vsel %vm274, %v278, %v263
    %s280 = sadd.s32 %s168, 7
    %s281 = sld [smem:[#allocation3 + %s280]]
    %p282 = scmp.gt.s32.totalorder %s281, 0
    %s283 = scalar_select %p282, %s281, 0
    %s284 = scalar_lea.vmem [#allocation4], %s283
    %v285 = vld [vmem:[%s284] sm:$0x1]
    %p286 = scmp.ge.s32.totalorder %s281, 0
    %s287 = scalar_select %p286, 1, 0
    %v288 = vstv %s287
    %vm289 = vcmp.eq.s32.totalorder %v288, 1
    %vm290 = vmand %vm156, %vm289
    %v291 = vlaneseq
    %v292 = vshrl.u32 %v291, 7
    %v293 = vsub.s32 0, %v292
    %v294 = vrot.slane %v285, %v293
    %v295 = vsel %vm290, %v294, %v279
    %s296 = scalar_lea.vmem [#allocation7], 8
    %297 = vst [vmem:[%s296] sm:$0xff] %v295
    %s298 = sadd.s32 %s28, 16
    %s299 = sld [smem:[#allocation3 + %s298]]
    %p300 = scmp.gt.s32.totalorder %s299, 0
    %s301 = scalar_select %p300, %s299, 0
    %s302 = scalar_lea.vmem [#allocation4], %s301
    %v303 = vld [vmem:[%s302] sm:$0x1]
    %p304 = scmp.ge.s32.totalorder %s299, 0
    %s305 = scalar_select %p304, 1, 0
    %v306 = vstv %s305
    %vm307 = vcmp.eq.s32.totalorder %v306, 1
    %vm308 = vmand %vm37, %vm307
    %v309 = vlaneseq
    %v310 = vshrl.u32 %v309, 7
    %v311 = vsub.s32 0, %v310
    %v312 = vrot.slane %v303, %v311
    %v313 = vsel %vm308, %v312, 0.0
    %s314 = sadd.s32 %s298, 1
    %s315 = sld [smem:[#allocation3 + %s314]]
    %p316 = scmp.gt.s32.totalorder %s315, 0
    %s317 = scalar_select %p316, %s315, 0
    %s318 = scalar_lea.vmem [#allocation4], %s317
    %v319 = vld [vmem:[%s318] sm:$0x1]
    %p320 = scmp.ge.s32.totalorder %s315, 0
    %s321 = scalar_select %p320, 1, 0
    %v322 = vstv %s321
    %vm323 = vcmp.eq.s32.totalorder %v322, 1
    %vm324 = vmand %vm54, %vm323
    %v325 = vlaneseq
    %v326 = vshrl.u32 %v325, 7
    %v327 = vsub.s32 0, %v326
    %v328 = vrot.slane %v319, %v327
    %v329 = vsel %vm324, %v328, %v313
    %s330 = sadd.s32 %s298, 2
    %s331 = sld [smem:[#allocation3 + %s330]]
    %p332 = scmp.gt.s32.totalorder %s331, 0
    %s333 = scalar_select %p332, %s331, 0
    %s334 = scalar_lea.vmem [#allocation4], %s333
    %v335 = vld [vmem:[%s334] sm:$0x1]
    %p336 = scmp.ge.s32.totalorder %s331, 0
    %s337 = scalar_select %p336, 1, 0
    %v338 = vstv %s337
    %vm339 = vcmp.eq.s32.totalorder %v338, 1
    %vm340 = vmand %vm71, %vm339
    %v341 = vlaneseq
    %v342 = vshrl.u32 %v341, 7
    %v343 = vsub.s32 0, %v342
    %v344 = vrot.slane %v335, %v343
    %v345 = vsel %vm340, %v344, %v329
    %s346 = sadd.s32 %s298, 3
    %s347 = sld [smem:[#allocation3 + %s346]]
    %p348 = scmp.gt.s32.totalorder %s347, 0
    %s349 = scalar_select %p348, %s347, 0
    %s350 = scalar_lea.vmem [#allocation4], %s349
    %v351 = vld [vmem:[%s350] sm:$0x1]
    %p352 = scmp.ge.s32.totalorder %s347, 0
    %s353 = scalar_select %p352, 1, 0
    %v354 = vstv %s353
    %vm355 = vcmp.eq.s32.totalorder %v354, 1
    %vm356 = vmand %vm88, %vm355
    %v357 = vlaneseq
    %v358 = vshrl.u32 %v357, 7
    %v359 = vsub.s32 0, %v358
    %v360 = vrot.slane %v351, %v359
    %v361 = vsel %vm356, %v360, %v345
    %s362 = sadd.s32 %s298, 4
    %s363 = sld [smem:[#allocation3 + %s362]]
    %p364 = scmp.gt.s32.totalorder %s363, 0
    %s365 = scalar_select %p364, %s363, 0
    %s366 = scalar_lea.vmem [#allocation4], %s365
    %v367 = vld [vmem:[%s366] sm:$0x1]
    %p368 = scmp.ge.s32.totalorder %s363, 0
    %s369 = scalar_select %p368, 1, 0
    %v370 = vstv %s369
    %vm371 = vcmp.eq.s32.totalorder %v370, 1
    %vm372 = vmand %vm105, %vm371
    %v373 = vlaneseq
    %v374 = vshrl.u32 %v373, 7
    %v375 = vsub.s32 0, %v374
    %v376 = vrot.slane %v367, %v375
    %v377 = vsel %vm372, %v376, %v361
    %s378 = sadd.s32 %s298, 5
    %s379 = sld [smem:[#allocation3 + %s378]]
    %p380 = scmp.gt.s32.totalorder %s379, 0
    %s381 = scalar_select %p380, %s379, 0
    %s382 = scalar_lea.vmem [#allocation4], %s381
    %v383 = vld [vmem:[%s382] sm:$0x1]
    %p384 = scmp.ge.s32.totalorder %s379, 0
    %s385 = scalar_select %p384, 1, 0
    %v386 = vstv %s385
    %vm387 = vcmp.eq.s32.totalorder %v386, 1
    %vm388 = vmand %vm122, %vm387
    %v389 = vlaneseq
    %v390 = vshrl.u32 %v389, 7
    %v391 = vsub.s32 0, %v390
    %v392 = vrot.slane %v383, %v391
    %v393 = vsel %vm388, %v392, %v377
    %s394 = sadd.s32 %s298, 6
    %s395 = sld [smem:[#allocation3 + %s394]]
    %p396 = scmp.gt.s32.totalorder %s395, 0
    %s397 = scalar_select %p396, %s395, 0
    %s398 = scalar_lea.vmem [#allocation4], %s397
    %v399 = vld [vmem:[%s398] sm:$0x1]
    %p400 = scmp.ge.s32.totalorder %s395, 0
    %s401 = scalar_select %p400, 1, 0
    %v402 = vstv %s401
    %vm403 = vcmp.eq.s32.totalorder %v402, 1
    %vm404 = vmand %vm139, %vm403
    %v405 = vlaneseq
    %v406 = vshrl.u32 %v405, 7
    %v407 = vsub.s32 0, %v406
    %v408 = vrot.slane %v399, %v407
    %v409 = vsel %vm404, %v408, %v393
    %s410 = sadd.s32 %s298, 7
    %s411 = sld [smem:[#allocation3 + %s410]]
    %p412 = scmp.gt.s32.totalorder %s411, 0
    %s413 = scalar_select %p412, %s411, 0
    %s414 = scalar_lea.vmem [#allocation4], %s413
    %v415 = vld [vmem:[%s414] sm:$0x1]
    %p416 = scmp.ge.s32.totalorder %s411, 0
    %s417 = scalar_select %p416, 1, 0
    %v418 = vstv %s417
    %vm419 = vcmp.eq.s32.totalorder %v418, 1
    %vm420 = vmand %vm156, %vm419
    %v421 = vlaneseq
    %v422 = vshrl.u32 %v421, 7
    %v423 = vsub.s32 0, %v422
    %v424 = vrot.slane %v415, %v423
    %v425 = vsel %vm420, %v424, %v409
    %s426 = scalar_lea.vmem [#allocation7], 16
    %427 = vst [vmem:[%s426] sm:$0xff] %v425
    // Predicated region
    $region10: #{tpu_custom_call.1} parent=1 // pred_check
      _
    $region11: #{tpu_custom_call.1} parent=1 // pred_check_branch
      %429 = sbr.rel (0) target = $region13
    $region12: #{tpu_custom_call.1} parent=1 // pred_region
      %s431 = ssub.s32 384, 384
      %432 = vsyncadd [#allocation6], %s431
      %s433 = sshll.u32 [#allocation7], 4
      %s434 = int_to_ptr.vmem [resolvable:$true] %s433
      %439 = dma.vmem_to_hbm [thread:$0]  %s434, 384, %s2, [#allocation6], 128, 128, 8
    $region13: #{tpu_custom_call.1} parent=1 // pred_fallthru
      _
    // Predicated region
    $region14: #{tpu_custom_call.1} parent=1 // pred_check
      _
    $region15: #{tpu_custom_call.1} parent=1 // pred_check_branch
      %441 = sbr.rel (0) target = $region17
    $region16: #{tpu_custom_call.1} parent=1 // pred_region
      %442 = dma.done [#allocation6], 384
    $region17: #{tpu_custom_call.1} parent=1 // pred_fallthru
      _
    %443 = vsyncpa [#allocation5], 1
    %444 = vsyncpa [#allocation6], 1

</llo_original>
